<compile_context>
chip_gen: v7x
topology: tpu7x:2x2x1
jax: 0.10.0
libtpu: 0.0.40
codegen_flags: <defaults>
</compile_context>

<pallas_src>
import functools

import jax
import jax.numpy as jnp
import numpy as np
from jax.experimental import pallas as pl
from jax.experimental.pallas import tpu as pltpu


def _attention_kernel(f_ref, m_ref, w_ref, b_ref, o_ref,
                      m_sc, l_sc, acc_sc, *, seq_valid=None):
    # f_ref: (TB, TS, D) feature tile, native dtype   (VMEM)
    # m_ref: (TB, TS)    mask tile, lane-dense        (VMEM)
    # w_ref: (1, D)      Linear weight, resident      (VMEM, constant index_map)
    # b_ref: (1, 1)      Linear bias                  (SMEM scalar)
    # o_ref: (TB, D)     output tile, written once    (VMEM)
    # m_sc/l_sc: (TB,1) f32 online-softmax max/denominator; acc_sc: (TB,D) f32.
    s_idx = pl.program_id(1)

    @pl.when(s_idx == 0)
    def _():
        m_sc[...] = jnp.full_like(m_sc, -jnp.inf)
        l_sc[...] = jnp.zeros_like(l_sc)
        acc_sc[...] = jnp.zeros_like(acc_sc)

    f = f_ref[...]                                    # (TB, TS, D) native dtype
    w = w_ref[...].astype(f.dtype)                    # (1, D)
    b = b_ref[0, 0]                                   # f32 scalar

    # Linear(D -> 1) + tanh, lane-dense (TB, TS): VPU broadcast-multiply +
    # lane reduction over D with f32 accumulation (no 1-wide MXU matmul,
    # no full-tile f32 materialization).
    proj = jnp.sum(f * w, axis=-1, dtype=jnp.float32)         # (TB, TS) f32
    att = jnp.tanh(proj + b)                                  # (TB, TS) f32

    # mask_logits as a single select.
    logits = jnp.where(m_ref[...] != 0, att, jnp.float32(-1e30))
    if seq_valid is not None:
        # Sequence was padded to a tile multiple: force padded positions to
        # -inf so they get exactly zero weight even for fully-masked rows.
        tb, ts = logits.shape
        pos = s_idx * ts + jax.lax.broadcasted_iota(jnp.int32, (tb, ts), 1)
        logits = jnp.where(pos < seq_valid, logits, -jnp.inf)

    # Online softmax over the sequence (lane) axis; weights stay un-normalized.
    m_prev = m_sc[...]
    m_new = jnp.maximum(m_prev, jnp.max(logits, axis=-1, keepdims=True))
    alpha = jnp.exp(m_prev - m_new)                           # (TB, 1)
    e = jnp.exp(logits - m_new)                               # (TB, TS) f32

    l_sc[...] = alpha * l_sc[...] + jnp.sum(e, axis=-1, keepdims=True)

    # Weighted feature sum on the VPU: native-dtype multiply, f32 accumulation.
    wsum = jnp.sum(f * e.astype(f.dtype)[:, :, None], axis=1,
                   dtype=jnp.float32)                         # (TB, D)
    acc_sc[...] = alpha * acc_sc[...] + wsum
    m_sc[...] = m_new

    @pl.when(s_idx == pl.num_programs(1) - 1)
    def _():
        inv_l = pl.reciprocal(l_sc[...], approx=True)         # EUP slot
        o_ref[...] = (acc_sc[...] * inv_l).astype(o_ref.dtype)


def _round_up(x, m):
    return ((x + m - 1) // m) * m


def _vmem_capacity_bytes():
    try:
        cap = getattr(pltpu.get_tpu_info(), "vmem_capacity_bytes", None)
        if cap:
            return int(cap)
    except Exception:
        pass
    return 64 * 1024 * 1024  # conservative fallback (v7x per-TC)


def _pick_tiles(B, S, D, itemsize, vmem_cap):
    """Returns (TB, TS): batch rows / sequence positions per grid step.

    Per feature pipeline buffer we budget ~vmem_cap/6 (double-buffered feature
    tile + mask/output/scratch + headroom). If the whole sequence for 8 batch
    rows fits, tile the batch only, aiming for >=4 (even) steps when B allows
    (v7x megacore + pipeline overlap). Otherwise tile the sequence in 128-wide
    chunks (online softmax handles the reduction)."""
    budget = max(vmem_cap // 6, 4 * 1024 * 1024)
    row_bytes = max(S * D * itemsize, 1)
    b_pad8 = _round_up(B, 8)

    if 8 * row_bytes <= budget:
        ts = S
        tb_max = max(8, (budget // row_bytes) // 8 * 8)
        n_steps = pl.cdiv(b_pad8, tb_max)
        max_steps = b_pad8 // 8
        if max_steps >= 2:
            n_steps = max(n_steps, min(4, max_steps))
        if n_steps > 1 and n_steps % 2 == 1 and n_steps + 1 <= max_steps:
            n_steps += 1                       # even split across 2 TensorCores
        tb = min(_round_up(pl.cdiv(b_pad8, n_steps), 8), b_pad8)
    else:
        # Long sequences: fix TB=8, tile S in multiples of 128 so both the
        # lane-dense mask tile and the feature sublane tile stay aligned.
        tb = 8
        ts_max = max(128, (budget // (8 * D * itemsize)) // 128 * 128)
        ts = min(_round_up(S, 128), ts_max)
    return tb, ts


def attention_forward(feature, mask, weight, bias, *, block_b=None, block_s=None):
    """feature: (B, S, D); mask: (B, S) of 0/1; weight: (1, D); bias: (1,).
    Returns (B, D), matching the PyTorch Attention.forward."""
    B, S, D = feature.shape
    dtype = feature.dtype
    itemsize = jnp.dtype(dtype).itemsize

    vmem_cap = _vmem_capacity_bytes()
    tb, ts = _pick_tiles(B, S, D, itemsize, vmem_cap)
    if block_b is not None:
        tb = block_b
    if block_s is not None:
        ts = block_s

    b_pad = _round_up(B, tb)
    s_pad = _round_up(S, ts)
    if b_pad != B or s_pad != S:
        # Padded batch rows have zero features + zero mask -> zero output,
        # sliced off below. Padded seq positions are forced to -inf in-kernel.
        feature = jnp.pad(feature, ((0, b_pad - B), (0, s_pad - S), (0, 0)))
        mask = jnp.pad(mask, ((0, b_pad - B), (0, s_pad - S)))

    mask = mask.astype(dtype)
    weight2 = weight.reshape(1, D).astype(dtype)
    bias_smem = bias.reshape(1, 1).astype(jnp.float32)

    grid = (b_pad // tb, s_pad // ts)
    seq_valid = S if s_pad != S else None
    kernel = functools.partial(_attention_kernel, seq_valid=seq_valid)

    # Generation-aware scoped-VMEM limit: ~100 MiB on v5e/v6e, ~48 MiB on v7x.
    vmem_limit = int(max(min(vmem_cap - 16 * 1024 * 1024, 100 * 1024 * 1024),
                         32 * 1024 * 1024))

    cost = pl.CostEstimate(
        flops=4 * b_pad * s_pad * D,
        transcendentals=2 * b_pad * s_pad,
        bytes_accessed=(b_pad * s_pad * D * itemsize
                        + b_pad * s_pad * itemsize
                        + b_pad * D * itemsize),
    )

    out = pl.pallas_call(
        kernel,
        out_shape=jax.ShapeDtypeStruct((b_pad, D), dtype),
        grid=grid,
        in_specs=[
            pl.BlockSpec((tb, ts, D), lambda b, s: (b, s, 0)),   # feature
            pl.BlockSpec((tb, ts), lambda b, s: (b, s)),         # mask (lane-dense)
            pl.BlockSpec((1, D), lambda b, s: (0, 0)),           # weight (resident)
            pl.BlockSpec(memory_space=pltpu.MemorySpace.SMEM),   # bias scalar
        ],
        out_specs=pl.BlockSpec((tb, D), lambda b, s: (b, 0)),    # resident across s
        scratch_shapes=[
            pltpu.VMEM((tb, 1), jnp.float32),   # online-softmax running max
            pltpu.VMEM((tb, 1), jnp.float32),   # online-softmax denominator
            pltpu.VMEM((tb, D), jnp.float32),   # f32 output accumulator
        ],
        compiler_params=pltpu.CompilerParams(
            dimension_semantics=("parallel", "arbitrary"),
            vmem_limit_bytes=vmem_limit,
        ),
        cost_estimate=cost,
    )(feature, mask, weight2, bias_smem)

    return out[:B]


def attention_reference(feature, mask, weight, bias):
    # Pure-JAX reference mirroring the PyTorch forward exactly.
    att = jnp.tanh(jnp.einsum("bsd,od->bso", feature, weight) + bias)  # (B, S, 1)
    att = att[..., 0]                                                  # (B, S)
    logits = att * mask + (1.0 - mask) * (-1e30)
    score = jax.nn.softmax(logits, axis=1)[..., None]                  # (B, S, 1)
    out = jnp.einsum("bds,bso->bd", jnp.swapaxes(feature, 1, 2), score)
    return out


if __name__ == "__main__":
    B, S, D = 2, 8, 32  # batch, seq, in_dim

    key = jax.random.PRNGKey(0)
    k_feat, k_w, k_b = jax.random.split(key, 3)

    feature = jax.random.normal(k_feat, (B, S, D), dtype=jnp.float32)

    # Deterministic 0/1 mask with at least one valid position per row.
    mask_np = np.zeros((B, S), dtype=np.float32)
    mask_np[0, :5] = 1.0
    mask_np[1, :7] = 1.0
    mask = jnp.asarray(mask_np)

    # Deterministic parameter init (shapes from nn.Linear(in_dim, 1)).
    weight = jax.random.normal(k_w, (1, D), dtype=jnp.float32) * (1.0 / np.sqrt(D))
    bias = jax.random.normal(k_b, (1,), dtype=jnp.float32) * 0.01

    out = attention_forward(feature, mask, weight, bias)
    out = jax.block_until_ready(out)

    ref = attention_reference(feature, mask, weight, bias)
    # approx=True reciprocal (EUP) introduces ~1e-4 relative error vs. the
    # exact-division reference; tolerance reflects that.
    np.testing.assert_allclose(np.asarray(out), np.asarray(ref), rtol=2e-3, atol=2e-3)

    print("KERNEL_OK")
</pallas_src>

<mosaic_0001>
module attributes {stable_mosaic.version = 11 : i64} {
  func.func @_attention_kernel(%arg0: i32, %arg1: i32, %arg2: memref<8x8x32xf32, #tpu.memory_space<vmem>>, %arg3: memref<8x8xf32, #tpu.memory_space<vmem>>, %arg4: memref<1x32xf32, #tpu.memory_space<vmem>>, %arg5: memref<1x1xf32, #tpu.memory_space<smem>>, %arg6: memref<8x32xf32, #tpu.memory_space<vmem>>, %arg7: memref<8x1xf32, #tpu.memory_space<vmem>>, %arg8: memref<8x1xf32, #tpu.memory_space<vmem>>, %arg9: memref<8x32xf32, #tpu.memory_space<vmem>>) attributes {dimension_semantics = [#tpu.dimension_semantics<parallel>, #tpu.dimension_semantics<arbitrary>], iteration_bounds = array<i64: 1, 1>, scalar_prefetch = 0 : i64, scratch_operands = 3 : i64, tpu.core_type = #tpu.core_type<tc>, window_params = [{transform_indices = @transform_0, window_bounds = array<i64: 8, 8, 32>}, {transform_indices = @transform_1, window_bounds = array<i64: 8, 8>}, {pipeline_mode = #tpu.pipeline_mode<synchronous>, transform_indices = @transform_2, window_bounds = array<i64: 1, 32>}, {transform_indices = @transform_3, window_bounds = array<i64: 1, 1>}, {transform_indices = @transform_4, window_bounds = array<i64: 8, 32>}]} {
    %c0_i32 = arith.constant 0 : i32
    %0 = arith.cmpi eq, %arg1, %c0_i32 : i32
    %1 = arith.extui %0 : i1 to i32
    %c0_i32_0 = arith.constant 0 : i32
    %2 = arith.cmpi ne, %1, %c0_i32_0 : i32
    scf.if %2 {
      %cst_28 = arith.constant 0xFF800000 : f32
      %46 = vector.broadcast %cst_28 : f32 to vector<8x1xf32>
      %c0_29 = arith.constant 0 : index
      %c0_30 = arith.constant 0 : index
      %47 = vector.load %arg7[%c0_29, %c0_30] : memref<8x1xf32, #tpu.memory_space<vmem>>, vector<8x1xf32>
      tpu.vector_store %arg7[%c0_29, %c0_30], %46 {strides = array<i32>} : memref<8x1xf32, #tpu.memory_space<vmem>>, vector<8x1xf32>,
      %cst_31 = arith.constant 0.000000e+00 : f32
      %48 = vector.broadcast %cst_31 : f32 to vector<8x1xf32>
      %c0_32 = arith.constant 0 : index
      %c0_33 = arith.constant 0 : index
      %49 = vector.load %arg8[%c0_32, %c0_33] : memref<8x1xf32, #tpu.memory_space<vmem>>, vector<8x1xf32>
      tpu.vector_store %arg8[%c0_32, %c0_33], %48 {strides = array<i32>} : memref<8x1xf32, #tpu.memory_space<vmem>>, vector<8x1xf32>,
      %cst_34 = arith.constant 0.000000e+00 : f32
      %50 = vector.broadcast %cst_34 : f32 to vector<8x32xf32>
      %c0_35 = arith.constant 0 : index
      %c0_36 = arith.constant 0 : index
      %51 = vector.load %arg9[%c0_35, %c0_36] : memref<8x32xf32, #tpu.memory_space<vmem>>, vector<8x32xf32>
      tpu.vector_store %arg9[%c0_35, %c0_36], %50 {strides = array<i32>} : memref<8x32xf32, #tpu.memory_space<vmem>>, vector<8x32xf32>,
    } else {
    }
    %c0 = arith.constant 0 : index
    %c0_1 = arith.constant 0 : index
    %c0_2 = arith.constant 0 : index
    %3 = vector.load %arg2[%c0, %c0_1, %c0_2] : memref<8x8x32xf32, #tpu.memory_space<vmem>>, vector<8x8x32xf32>
    %c0_3 = arith.constant 0 : index
    %c0_4 = arith.constant 0 : index
    %4 = vector.load %arg4[%c0_3, %c0_4] : memref<1x32xf32, #tpu.memory_space<vmem>>, vector<1x32xf32>
    %c0_5 = arith.constant 0 : index
    %c0_6 = arith.constant 0 : index
    %5 = memref.load %arg5[%c0_5, %c0_6] : memref<1x1xf32, #tpu.memory_space<smem>>
    %6 = vector.shape_cast %4 : vector<1x32xf32> to vector<1x1x32xf32>
    %7 = vector.broadcast %6 : vector<1x1x32xf32> to vector<8x8x32xf32>
    %8 = arith.mulf %3, %7 : vector<8x8x32xf32>
    %cst = arith.constant dense<0.000000e+00> : vector<8x8xf32>
    %9 = vector.multi_reduction <add>, %8, %cst [2] : vector<8x8x32xf32> to vector<8x8xf32>
    %10 = vector.broadcast %5 : f32 to vector<8x8xf32>
    %11 = arith.addf %9, %10 : vector<8x8xf32>
    %12 = math.tanh %11 : vector<8x8xf32>
    %c0_7 = arith.constant 0 : index
    %c0_8 = arith.constant 0 : index
    %13 = vector.load %arg3[%c0_7, %c0_8] : memref<8x8xf32, #tpu.memory_space<vmem>>, vector<8x8xf32>
    %cst_9 = arith.constant 0.000000e+00 : f32
    %14 = vector.broadcast %cst_9 : f32 to vector<8x8xf32>
    %15 = arith.cmpf one, %13, %14 : vector<8x8xf32>
    %cst_10 = arith.constant -1.000000e+30 : f32
    %16 = vector.broadcast %cst_10 : f32 to vector<8x8xf32>
    %17 = arith.select %15, %12, %16 : vector<8x8xi1>, vector<8x8xf32>
    %c0_11 = arith.constant 0 : index
    %c0_12 = arith.constant 0 : index
    %18 = vector.load %arg7[%c0_11, %c0_12] : memref<8x1xf32, #tpu.memory_space<vmem>>, vector<8x1xf32>
    %cst_13 = arith.constant dense<0xFF800000> : vector<8xf32>
    %19 = vector.multi_reduction <maximumf>, %17, %cst_13 [1] : vector<8x8xf32> to vector<8xf32>
    %20 = vector.shape_cast %19 : vector<8xf32> to vector<8x1xf32>
    %21 = arith.maximumf %18, %20 : vector<8x1xf32>
    %22 = arith.subf %18, %21 : vector<8x1xf32>
    %23 = math.exp %22 : vector<8x1xf32>
    %24 = vector.broadcast %21 : vector<8x1xf32> to vector<8x8xf32>
    %25 = arith.subf %17, %24 : vector<8x8xf32>
    %26 = math.exp %25 : vector<8x8xf32>
    %c0_14 = arith.constant 0 : index
    %c0_15 = arith.constant 0 : index
    %27 = vector.load %arg8[%c0_14, %c0_15] : memref<8x1xf32, #tpu.memory_space<vmem>>, vector<8x1xf32>
    %28 = arith.mulf %23, %27 : vector<8x1xf32>
    %cst_16 = arith.constant dense<0.000000e+00> : vector<8xf32>
    %29 = vector.multi_reduction <add>, %26, %cst_16 [1] : vector<8x8xf32> to vector<8xf32>
    %30 = vector.shape_cast %29 : vector<8xf32> to vector<8x1xf32>
    %31 = arith.addf %28, %30 : vector<8x1xf32>
    %c0_17 = arith.constant 0 : index
    %c0_18 = arith.constant 0 : index
    %32 = vector.load %arg8[%c0_17, %c0_18] : memref<8x1xf32, #tpu.memory_space<vmem>>, vector<8x1xf32>
    tpu.vector_store %arg8[%c0_17, %c0_18], %31 {strides = array<i32>} : memref<8x1xf32, #tpu.memory_space<vmem>>, vector<8x1xf32>,
    %33 = vector.shape_cast %26 : vector<8x8xf32> to vector<8x8x1xf32>
    %34 = vector.broadcast %33 : vector<8x8x1xf32> to vector<8x8x32xf32>
    %35 = arith.mulf %3, %34 : vector<8x8x32xf32>
    %cst_19 = arith.constant dense<0.000000e+00> : vector<8x32xf32>
    %36 = vector.multi_reduction <add>, %35, %cst_19 [1] : vector<8x8x32xf32> to vector<8x32xf32>
    %c0_20 = arith.constant 0 : index
    %c0_21 = arith.constant 0 : index
    %37 = vector.load %arg9[%c0_20, %c0_21] : memref<8x32xf32, #tpu.memory_space<vmem>>, vector<8x32xf32>
    %38 = vector.broadcast %23 : vector<8x1xf32> to vector<8x32xf32>
    %39 = arith.mulf %38, %37 : vector<8x32xf32>
    %40 = arith.addf %39, %36 : vector<8x32xf32>
    %c0_22 = arith.constant 0 : index
    %c0_23 = arith.constant 0 : index
    %41 = vector.load %arg9[%c0_22, %c0_23] : memref<8x32xf32, #tpu.memory_space<vmem>>, vector<8x32xf32>
    tpu.vector_store %arg9[%c0_22, %c0_23], %40 {strides = array<i32>} : memref<8x32xf32, #tpu.memory_space<vmem>>, vector<8x32xf32>,
    %c0_24 = arith.constant 0 : index
    %c0_25 = arith.constant 0 : index
    %42 = vector.load %arg7[%c0_24, %c0_25] : memref<8x1xf32, #tpu.memory_space<vmem>>, vector<8x1xf32>
    tpu.vector_store %arg7[%c0_24, %c0_25], %21 {strides = array<i32>} : memref<8x1xf32, #tpu.memory_space<vmem>>, vector<8x1xf32>,
    %c0_i32_26 = arith.constant 0 : i32
    %43 = arith.cmpi eq, %arg1, %c0_i32_26 : i32
    %44 = arith.extui %43 : i1 to i32
    %c0_i32_27 = arith.constant 0 : i32
    %45 = arith.cmpi ne, %44, %c0_i32_27 : i32
    scf.if %45 {
      %c0_28 = arith.constant 0 : index
      %c0_29 = arith.constant 0 : index
      %46 = vector.load %arg8[%c0_28, %c0_29] : memref<8x1xf32, #tpu.memory_space<vmem>>, vector<8x1xf32>
      %47 = tpu.reciprocal %46 {approx = true} : vector<8x1xf32> -> vector<8x1xf32>
      %c0_30 = arith.constant 0 : index
      %c0_31 = arith.constant 0 : index
      %48 = vector.load %arg9[%c0_30, %c0_31] : memref<8x32xf32, #tpu.memory_space<vmem>>, vector<8x32xf32>
      %49 = vector.broadcast %47 : vector<8x1xf32> to vector<8x32xf32>
      %50 = arith.mulf %48, %49 : vector<8x32xf32>
      %c0_32 = arith.constant 0 : index
      %c0_33 = arith.constant 0 : index
      %51 = vector.load %arg6[%c0_32, %c0_33] : memref<8x32xf32, #tpu.memory_space<vmem>>, vector<8x32xf32>
      tpu.vector_store %arg6[%c0_32, %c0_33], %50 {strides = array<i32>} : memref<8x32xf32, #tpu.memory_space<vmem>>, vector<8x32xf32>,
    } else {
    }
    return
  }
  func.func @transform_0(%arg0: i32, %arg1: i32) -> (i32, i32, i32) {
    %c0_i32 = arith.constant 0 : i32
    %c0_i32_0 = arith.constant 0 : i32
    return %arg0, %arg1, %c0_i32 : i32, i32, i32
  }
  func.func @transform_1(%arg0: i32, %arg1: i32) -> (i32, i32) {
    %c0_i32 = arith.constant 0 : i32
    return %arg0, %arg1 : i32, i32
  }
  func.func @transform_2(%arg0: i32, %arg1: i32) -> (i32, i32) {
    %c0_i32 = arith.constant 0 : i32
    %c0_i32_0 = arith.constant 0 : i32
    %c0_i32_1 = arith.constant 0 : i32
    return %c0_i32, %c0_i32_0 : i32, i32
  }
  func.func @transform_3(%arg0: i32, %arg1: i32) -> (i32, i32) {
    %c0_i32 = arith.constant 0 : i32
    %c0_i32_0 = arith.constant 0 : i32
    %c0_i32_1 = arith.constant 0 : i32
    return %c0_i32, %c0_i32_0 : i32, i32
  }
  func.func @transform_4(%arg0: i32, %arg1: i32) -> (i32, i32) {
    %c0_i32 = arith.constant 0 : i32
    %c0_i32_0 = arith.constant 0 : i32
    return %arg0, %c0_i32 : i32, i32
  }
}

</mosaic_0001>

<llo_original>
// kernel: tpu_custom_call.1
$region0: #{tpu_custom_call.1}
  #allocation0 [shape = 'u32[]', space=smem, size = 0x4, offset = 0x4, fixed_abs, tag = 'smem constant byte address 0x4 - core index']
  #allocation1 [shape = 'u32[144,128]{1,0:T(1,128)}', space=vmem, size = 0x12000, scoped, tag = 'internal scratch']
  #allocation2 [shape = 'f32[8,1]{1,0:T(8,128)}', space=vmem, size = 0x1000, scoped, tag = 'scratch operand']
  #allocation3 [shape = 'f32[8,1]{1,0:T(8,128)}', space=vmem, size = 0x1000, scoped, tag = 'scratch operand']
  #allocation4 [shape = 'f32[8,32]{1,0:T(8,128)}', space=vmem, size = 0x1000, scoped, tag = 'scratch operand']
  #allocation5 [shape = 'f32[1,1]{1,0:T(1,128)S(6)}', space=smem, size = 0x200, scoped, tag = 'scoped memory for tpu_custom_call.1']
  %s0 = inlined_call_operand.hbm [shape: f32[8,8,32], index: 0, kind: input, shape index: {}]
  %s1 = inlined_call_operand.hbm [shape: f32[8,8], index: 1, kind: input, shape index: {}]
  %s2 = inlined_call_operand.vmem [shape: f32[1,32], index: 2, kind: input, shape index: {}]
  %s3 = inlined_call_operand.<no memory space> [shape: f32[1,1], index: 3, kind: input, shape index: {}]
  %s4 = inlined_call_operand.hbm [shape: f32[8,32], index: 4, kind: output, shape index: {}]
  %s5 = sld [smem:[#allocation0]]
  $region42: #{tpu_custom_call.1} parent=0
    _
  %s7 = ssub.s32 1, %s5
  %s8 = scalar_select 0, %s7, %s5
  %9 = sst [smem:[#allocation5]] %s3
  $region1: #{tpu_custom_call.1} parent=0
    #allocation6 [shape = 'u8[32768]{0}', space=vmem, size = 0x8000, scoped, tag = 'input window, operand 0, single buffered']
    #allocation7 [shape = 's32[1]{0}', space=sflag, size = 0x4, scoped, tag = 'scoped memory for tpu_custom_call.1']
    #allocation8 [shape = 's32[1]{0}', space=sflag, size = 0x4, scoped, tag = 'scoped memory for tpu_custom_call.1']
    #allocation9 [shape = 'u8[4096]{0}', space=vmem, size = 0x1000, scoped, tag = 'input window, operand 1, single buffered']
    #allocation10 [shape = 's32[1]{0}', space=sflag, size = 0x4, scoped, tag = 'scoped memory for tpu_custom_call.1']
    #allocation11 [shape = 'u8[4096]{0}', space=vmem, size = 0x1000, scoped, tag = 'output window, operand 0, single buffered']
    %10 = vsyncpa [#allocation7], 0
    %11 = vsyncpa [#allocation10], 0
    %12 = vsyncpa [#allocation8], 0
    // Predicated region
    $region2: #{tpu_custom_call.1} parent=1 // pred_check
      _
    $region3: #{tpu_custom_call.1} parent=1 // pred_check_branch
      %14 = sbr.rel (0) target = $region5
    $region4: #{tpu_custom_call.1} parent=1 // pred_region
      %s16 = ssub.s32 1024, 1024
      %17 = vsyncadd [#allocation7], %s16
      %s18 = sshll.u32 [#allocation6], 4
      %s19 = int_to_ptr.vmem [resolvable:$true] %s18
      %24 = dma.hbm_to_vmem [thread:$0]  %s0, 1024, %s19, [#allocation7], 128, 128, 8
    $region5: #{tpu_custom_call.1} parent=1 // pred_fallthru
      _
    // Predicated region
    $region6: #{tpu_custom_call.1} parent=1 // pred_check
      _
    $region7: #{tpu_custom_call.1} parent=1 // pred_check_branch
      %26 = sbr.rel (0) target = $region9
    $region8: #{tpu_custom_call.1} parent=1 // pred_region
      %s28 = ssub.s32 128, 128
      %29 = vsyncadd [#allocation10], %s28
      %s31 = sshll.u32 [#allocation9], 4
      %s32 = int_to_ptr.vmem [resolvable:$true] %s31
      %34 = dma.hbm_to_vmem [thread:$0]  %s1, 128, %s32, [#allocation10]
    $region9: #{tpu_custom_call.1} parent=1 // pred_fallthru
      _
    // Predicated region
    $region10: #{tpu_custom_call.1} parent=1 // pred_check
      _
    $region11: #{tpu_custom_call.1} parent=1 // pred_check_branch
      %36 = sbr.rel (0) target = $region13
    $region12: #{tpu_custom_call.1} parent=1 // pred_region
      _
    $region13: #{tpu_custom_call.1} parent=1 // pred_fallthru
      _
    // Predicated region
    $region14: #{tpu_custom_call.1} parent=1 // pred_check
      _
    $region15: #{tpu_custom_call.1} parent=1 // pred_check_branch
      %38 = sbr.rel (0) target = $region17
    $region16: #{tpu_custom_call.1} parent=1 // pred_region
      _
    $region17: #{tpu_custom_call.1} parent=1 // pred_fallthru
      _
    // Predicated region
    $region18: #{tpu_custom_call.1} parent=1 // pred_check
      _
    $region19: #{tpu_custom_call.1} parent=1 // pred_check_branch
      %40 = sbr.rel (0) target = $region21
    $region20: #{tpu_custom_call.1} parent=1 // pred_region
      %41 = dma.done [#allocation7], 1024
    $region21: #{tpu_custom_call.1} parent=1 // pred_fallthru
      _
    // Predicated region
    $region22: #{tpu_custom_call.1} parent=1 // pred_check
      _
    $region23: #{tpu_custom_call.1} parent=1 // pred_check_branch
      %43 = sbr.rel (0) target = $region25
    $region24: #{tpu_custom_call.1} parent=1 // pred_region
      %44 = dma.done [#allocation10], 128
    $region25: #{tpu_custom_call.1} parent=1 // pred_fallthru
      _
    %p45 = scmp.eq.s32.totalorder 0, 0
    // Predicated region
    $region26: #{tpu_custom_call.1} parent=1 // pred_check
      %p46 = pneg %p45
    $region27: #{tpu_custom_call.1} parent=1 // pred_check_branch
      %48 = sbr.rel (%p46) target = $region29
    $region28: #{tpu_custom_call.1} parent=1 // pred_region
      %vm49 = vcmask 7168
      %50 = vst.msk [vmem:[#allocation2] sm:$0xff] %vm49, -inf
      %51 = vst.msk [vmem:[#allocation3] sm:$0xff] %vm49, 0.0
      %vm52 = vcmask 261120
      %53 = vst.msk [vmem:[#allocation4] sm:$0xff] %vm52, 0.0
    $region29: #{tpu_custom_call.1} parent=1 // pred_fallthru
      _
    %v54 = vld [vmem:[#allocation6] sm:$0xff]
    %v55 = vld [vmem:[#allocation6 + $0x8] sm:$0xff]
    %v56 = vld [vmem:[#allocation6 + $0x10] sm:$0xff]
    %v57 = vld [vmem:[#allocation6 + $0x18] sm:$0xff]
    %v58 = vld [vmem:[#allocation6 + $0x20] sm:$0xff]
    %v59 = vld [vmem:[#allocation6 + $0x28] sm:$0xff]
    %v60 = vld [vmem:[#allocation6 + $0x30] sm:$0xff]
    %v61 = vld [vmem:[#allocation6 + $0x38] sm:$0xff]
    %v62 = vld [vmem:[%s2] sm:$0x1]
    %s63 = sld [smem:[#allocation5]]
    %v65 = vlaneseq
    %v66 = vshrl.u32 %v65, 7
    %v67 = vsub.s32 0, %v66
    %v68 = vrot.slane %v62, %v67
    %v70 = vmul.f32 %v54, %v68
    %v71 = vmul.f32 %v55, %v68
    %v72 = vmul.f32 %v56, %v68
    %v73 = vmul.f32 %v57, %v68
    %v74 = vmul.f32 %v58, %v68
    %v75 = vmul.f32 %v59, %v68
    %v76 = vmul.f32 %v60, %v68
    %v77 = vmul.f32 %v61, %v68
    %vm78 = vcmask 261120
    %v79 = vsel %vm78, %v70, 0.0
    %80 = vadd.xlane.f32.xlu0 %v79
    %v81 = vpop.xlane.xlu0 %80
    %v82 = vsel %vm78, %v71, 0.0
    %83 = vadd.xlane.f32.xlu0 %v82
    %v84 = vpop.xlane.xlu0 %83
    %v85 = vsel %vm78, %v72, 0.0
    %86 = vadd.xlane.f32.xlu0 %v85
    %v87 = vpop.xlane.xlu0 %86
    %v88 = vsel %vm78, %v73, 0.0
    %89 = vadd.xlane.f32.xlu0 %v88
    %v90 = vpop.xlane.xlu0 %89
    %v91 = vsel %vm78, %v74, 0.0
    %92 = vadd.xlane.f32.xlu0 %v91
    %v93 = vpop.xlane.xlu0 %92
    %v94 = vsel %vm78, %v75, 0.0
    %95 = vadd.xlane.f32.xlu0 %v94
    %v96 = vpop.xlane.xlu0 %95
    %v97 = vsel %vm78, %v76, 0.0
    %98 = vadd.xlane.f32.xlu0 %v97
    %v99 = vpop.xlane.xlu0 %98
    %v100 = vsel %vm78, %v77, 0.0
    %101 = vadd.xlane.f32.xlu0 %v100
    %v102 = vpop.xlane.xlu0 %101
    %v103 = vstv %s63
    %v104 = vadd.f32 %v81, %v103
    %v105 = vadd.f32 %v84, %v103
    %v106 = vadd.f32 %v87, %v103
    %v107 = vadd.f32 %v90, %v103
    %v108 = vadd.f32 %v93, %v103
    %v109 = vadd.f32 %v96, %v103
    %v110 = vadd.f32 %v99, %v103
    %v111 = vadd.f32 %v102, %v103
    %v112 = vtanh.pop %v104
    %v113 = vtanh.pop %v105
    %v114 = vtanh.pop %v106
    %v115 = vtanh.pop %v107
    %v116 = vtanh.pop %v108
    %v117 = vtanh.pop %v109
    %v118 = vtanh.pop %v110
    %v119 = vtanh.pop %v111
    %v120 = vld [vmem:[#allocation9] sm:$0xff]
    %vm121 = vcmp.ne.f32.partialorder %v120, 0.0
    %v130 = vlaneseq
    %v131 = vand.u32 %v130, 127
    %v132 = vlaneseq
    %v133 = vshrl.u32 %v132, 7
    %v134 = vsub.s32 %v131, %v133
    %v135 = vrot.slane %v112, %v134
    %v136 = vlaneseq
    %v137 = vshrl.u32 %v136, 7
    %v138 = vsub.s32 %v131, %v137
    %v139 = vrot.slane %v113, %v138
    %v140 = vlaneseq
    %v141 = vshrl.u32 %v140, 7
    %v142 = vsub.s32 %v131, %v141
    %v143 = vrot.slane %v114, %v142
    %v144 = vlaneseq
    %v145 = vshrl.u32 %v144, 7
    %v146 = vsub.s32 %v131, %v145
    %v147 = vrot.slane %v115, %v146
    %v148 = vlaneseq
    %v149 = vshrl.u32 %v148, 7
    %v150 = vsub.s32 %v131, %v149
    %v151 = vrot.slane %v116, %v150
    %v152 = vlaneseq
    %v153 = vshrl.u32 %v152, 7
    %v154 = vsub.s32 %v131, %v153
    %v155 = vrot.slane %v117, %v154
    %v156 = vlaneseq
    %v157 = vshrl.u32 %v156, 7
    %v158 = vsub.s32 %v131, %v157
    %v159 = vrot.slane %v118, %v158
    %v160 = vlaneseq
    %v161 = vshrl.u32 %v160, 7
    %v162 = vsub.s32 %v131, %v161
    %v163 = vrot.slane %v119, %v162
    %vm164 = vcmask 1041409
    %v165 = vsel %vm164, %v139, %v135
    %vm166 = vcmask 1042434
    %v167 = vsel %vm166, %v143, %v165
    %vm168 = vcmask 1043459
    %v169 = vsel %vm168, %v147, %v167
    %vm170 = vcmask 1044484
    %v171 = vsel %vm170, %v151, %v169
    %vm172 = vcmask 1045509
    %v173 = vsel %vm172, %v155, %v171
    %vm174 = vcmask 1046534
    %v175 = vsel %vm174, %v159, %v173
    %vm176 = vcmask 1047559
    %v177 = vsel %vm176, %v163, %v175
    %v179 = vsel %vm121, %v177, -1e+30
    %v180 = vld [vmem:[#allocation2] sm:$0xff]
    %vm181 = vcmask 64512
    %v182 = vsel %vm181, %v179, -inf
    %183 = vmax.xlane.f32.xlu0 %v182
    %v184 = vpop.xlane.xlu0 %183
    %v185 = vmax.f32 %v180, %v184
    %v186 = vsub.f32 %v180, %v185
    %v187 = vmul.f32 %v186, 1.442695
    %v188 = vpow.pop %v187
    %190 = vset.pattern.permute.xlu0 0
    %191 = vperm.xlu0 %190, %v185
    %v192 = vpop.permute.xlu0 %191
    %v194 = vsub.f32 %v179, %v192
    %v195 = vmul.f32 %v194, 1.442695
    %v196 = vpow.pop %v195
    %v197 = vld [vmem:[#allocation3] sm:$0xff]
    %v198 = vmul.f32 %v188, %v197
    %v199 = vsel %vm181, %v196, 0.0
    %200 = vadd.xlane.f32.xlu0 %v199
    %v201 = vpop.xlane.xlu0 %200
    %v202 = vadd.f32 %v198, %v201
    %vm203 = vcmask 7168
    %204 = vst.msk [vmem:[#allocation3] sm:$0xff] %vm203, %v202
    %v205 = vlaneseq
    %v206 = vshrl.u32 %v205, 7
    %v207 = vsub.s32 0, %v206
    %v208 = vrot.slane %v196, %v207
    %210 = vbcast.lane.b32.xlu0 %v208, 256
    %v211 = vpop.permute.xlu0 %210
    %v212 = vlaneseq
    %v213 = vshrl.u32 %v212, 7
    %v214 = vsub.s32 1, %v213
    %v215 = vrot.slane %v196, %v214
    %217 = vbcast.lane.b32.xlu0 %v215, 256
    %v218 = vpop.permute.xlu0 %217
    %v219 = vlaneseq
    %v220 = vshrl.u32 %v219, 7
    %v221 = vsub.s32 2, %v220
    %v222 = vrot.slane %v196, %v221
    %224 = vbcast.lane.b32.xlu0 %v222, 256
    %v225 = vpop.permute.xlu0 %224
    %v226 = vlaneseq
    %v227 = vshrl.u32 %v226, 7
    %v228 = vsub.s32 3, %v227
    %v229 = vrot.slane %v196, %v228
    %231 = vbcast.lane.b32.xlu0 %v229, 256
    %v232 = vpop.permute.xlu0 %231
    %v233 = vlaneseq
    %v234 = vshrl.u32 %v233, 7
    %v235 = vsub.s32 4, %v234
    %v236 = vrot.slane %v196, %v235
    %238 = vbcast.lane.b32.xlu0 %v236, 256
    %v239 = vpop.permute.xlu0 %238
    %v240 = vlaneseq
    %v241 = vshrl.u32 %v240, 7
    %v242 = vsub.s32 5, %v241
    %v243 = vrot.slane %v196, %v242
    %245 = vbcast.lane.b32.xlu0 %v243, 256
    %v246 = vpop.permute.xlu0 %245
    %v247 = vlaneseq
    %v248 = vshrl.u32 %v247, 7
    %v249 = vsub.s32 6, %v248
    %v250 = vrot.slane %v196, %v249
    %252 = vbcast.lane.b32.xlu0 %v250, 256
    %v253 = vpop.permute.xlu0 %252
    %v254 = vlaneseq
    %v255 = vshrl.u32 %v254, 7
    %v256 = vsub.s32 7, %v255
    %v257 = vrot.slane %v196, %v256
    %259 = vbcast.lane.b32.xlu0 %v257, 256
    %v260 = vpop.permute.xlu0 %259
    %v261 = vmul.f32 %v54, %v211
    %v262 = vmul.f32 %v55, %v218
    %v263 = vmul.f32 %v56, %v225
    %v264 = vmul.f32 %v57, %v232
    %v265 = vmul.f32 %v58, %v239
    %v266 = vmul.f32 %v59, %v246
    %v267 = vmul.f32 %v60, %v253
    %v268 = vmul.f32 %v61, %v260
    %v269 = vsel %vm78, %v261, 0.0
    %v270 = vrot.slane %v269, 4
    %v271 = vadd.f32 %v269, %v270
    %v272 = vrot.slane %v271, 2
    %v273 = vadd.f32 %v271, %v272
    %v274 = vrot.slane %v273, 1
    %v275 = vadd.f32 %v273, %v274
    %v276 = vsel %vm78, %v262, 0.0
    %v277 = vrot.slane %v276, 4
    %v278 = vadd.f32 %v276, %v277
    %v279 = vrot.slane %v278, 2
    %v280 = vadd.f32 %v278, %v279
    %v281 = vrot.slane %v280, 1
    %v282 = vadd.f32 %v280, %v281
    %v283 = vsel %vm78, %v263, 0.0
    %v284 = vrot.slane %v283, 4
    %v285 = vadd.f32 %v283, %v284
    %v286 = vrot.slane %v285, 2
    %v287 = vadd.f32 %v285, %v286
    %v288 = vrot.slane %v287, 1
    %v289 = vadd.f32 %v287, %v288
    %v290 = vsel %vm78, %v264, 0.0
    %v291 = vrot.slane %v290, 4
    %v292 = vadd.f32 %v290, %v291
    %v293 = vrot.slane %v292, 2
    %v294 = vadd.f32 %v292, %v293
    %v295 = vrot.slane %v294, 1
    %v296 = vadd.f32 %v294, %v295
    %v297 = vsel %vm78, %v265, 0.0
    %v298 = vrot.slane %v297, 4
    %v299 = vadd.f32 %v297, %v298
    %v300 = vrot.slane %v299, 2
    %v301 = vadd.f32 %v299, %v300
    %v302 = vrot.slane %v301, 1
    %v303 = vadd.f32 %v301, %v302
    %v304 = vsel %vm78, %v266, 0.0
    %v305 = vrot.slane %v304, 4
    %v306 = vadd.f32 %v304, %v305
    %v307 = vrot.slane %v306, 2
    %v308 = vadd.f32 %v306, %v307
    %v309 = vrot.slane %v308, 1
    %v310 = vadd.f32 %v308, %v309
    %v311 = vsel %vm78, %v267, 0.0
    %v312 = vrot.slane %v311, 4
    %v313 = vadd.f32 %v311, %v312
    %v314 = vrot.slane %v313, 2
    %v315 = vadd.f32 %v313, %v314
    %v316 = vrot.slane %v315, 1
    %v317 = vadd.f32 %v315, %v316
    %v318 = vsel %vm78, %v268, 0.0
    %v319 = vrot.slane %v318, 4
    %v320 = vadd.f32 %v318, %v319
    %v321 = vrot.slane %v320, 2
    %v322 = vadd.f32 %v320, %v321
    %v323 = vrot.slane %v322, 1
    %v324 = vadd.f32 %v322, %v323
    %v325 = vld [vmem:[#allocation4] sm:$0xff]
    %327 = vset.pattern.permute.xlu0 0
    %328 = vperm.xlu0 %327, %v188
    %v329 = vpop.permute.xlu0 %328
    %v331 = vmul.f32 %v329, %v325
    %v340 = vsel %vm164, %v282, %v275
    %v341 = vsel %vm166, %v289, %v340
    %v342 = vsel %vm168, %v296, %v341
    %v343 = vsel %vm170, %v303, %v342
    %v344 = vsel %vm172, %v310, %v343
    %v345 = vsel %vm174, %v317, %v344
    %v346 = vsel %vm176, %v324, %v345
    %v348 = vadd.f32 %v331, %v346
    %349 = vst.msk [vmem:[#allocation4] sm:$0xff] %vm78, %v348
    %350 = vst.msk [vmem:[#allocation2] sm:$0xff] %vm203, %v185
    // Predicated region
    $region30: #{tpu_custom_call.1} parent=1 // pred_check
      %p351 = pneg %p45
    $region31: #{tpu_custom_call.1} parent=1 // pred_check_branch
      %353 = sbr.rel (%p351) target = $region33
    $region32: #{tpu_custom_call.1} parent=1 // pred_region
      %v354 = vld [vmem:[#allocation3] sm:$0xff]
      %v355 = vrcp.pop %v354
      %v356 = vld [vmem:[#allocation4] sm:$0xff]
      %358 = vset.pattern.permute.xlu0 0
      %359 = vperm.xlu0 %358, %v355
      %v360 = vpop.permute.xlu0 %359
      %v362 = vmul.f32 %v356, %v360
      %363 = vst.msk [vmem:[#allocation11] sm:$0xff] %vm78, %v362
    $region33: #{tpu_custom_call.1} parent=1 // pred_fallthru
      _
    // Predicated region
    $region34: #{tpu_custom_call.1} parent=1 // pred_check
      _
    $region35: #{tpu_custom_call.1} parent=1 // pred_check_branch
      %365 = sbr.rel (0) target = $region37
    $region36: #{tpu_custom_call.1} parent=1 // pred_region
      %s367 = ssub.s32 128, 128
      %368 = vsyncadd [#allocation8], %s367
      %s370 = sshll.u32 [#allocation11], 4
      %s371 = int_to_ptr.vmem [resolvable:$true] %s370
      %373 = dma.vmem_to_hbm [thread:$0]  %s371, 128, %s4, [#allocation8]
    $region37: #{tpu_custom_call.1} parent=1 // pred_fallthru
      _
    // Predicated region
    $region38: #{tpu_custom_call.1} parent=1 // pred_check
      _
    $region39: #{tpu_custom_call.1} parent=1 // pred_check_branch
      %375 = sbr.rel (0) target = $region41
    $region40: #{tpu_custom_call.1} parent=1 // pred_region
      %376 = dma.done [#allocation8], 128
    $region41: #{tpu_custom_call.1} parent=1 // pred_fallthru
      _
    %377 = vsyncpa [#allocation7], 1
    %378 = vsyncpa [#allocation10], 1
    %379 = vsyncpa [#allocation8], 1

</llo_original>
